<compile_context>
chip_gen: v5e
topology: v5e:2x2
jax: 0.10.0
libtpu: 0.0.40
codegen_flags: <defaults>
</compile_context>

<pallas_src>
import functools
import math

import jax
import jax.numpy as jnp
from jax.experimental import pallas as pl
from jax.experimental.pallas import tpu as pltpu


_VP_SCALE = 1.7015043497085571
_INV_SQRT2 = 0.7071067811865476
_WS_EPS = 1e-4


# ----------------------------------------------------------------------------
# In-kernel math helpers (only ops guaranteed to lower in Mosaic).
# ----------------------------------------------------------------------------
def _erf(x):
    # Abramowitz & Stegun 7.1.26 rational approximation, |err| <= 1.5e-7,
    # i.e. float32-exact. Uses only abs/sign/exp/mul/add/div.
    p = 0.3275911
    a1, a2, a3, a4, a5 = (0.254829592, -0.284496736, 1.421413741,
                          -1.453152027, 1.061405429)
    s = jnp.sign(x)
    ax = jnp.abs(x)
    t = 1.0 / (1.0 + p * ax)
    poly = ((((a5 * t + a4) * t + a3) * t + a2) * t + a1) * t
    return s * (1.0 - poly * jnp.exp(-ax * ax))


def _vp_gelu(x):
    # Exact (erf-based) GELU, matching torch.nn.functional.gelu default,
    # times the VPGELU variance-preserving scale.
    return 0.5 * x * (1.0 + _erf(x * _INV_SQRT2)) * _VP_SCALE


# ----------------------------------------------------------------------------
# WSConv2D.standardized_weights() as a Pallas kernel.
# ----------------------------------------------------------------------------
def _ws_kernel(w_ref, g_ref, o_ref, *, fan_in):
    w = w_ref[...].astype(jnp.float32)          # (Cout, Cin*KH*KW)
    g = g_ref[...].astype(jnp.float32)          # (Cout, 1)
    mean = jnp.mean(w, axis=1, keepdims=True)
    # torch.var default is unbiased -> divide by (fan_in - 1).
    var = jnp.sum((w - mean) ** 2, axis=1, keepdims=True) / (fan_in - 1.0)
    scale = jax.lax.rsqrt(jnp.maximum(var * fan_in, _WS_EPS))
    o_ref[...] = ((w - mean) * scale * g).astype(o_ref.dtype)


def standardize_weights(w_oihw, gain):
    """(Cout, Cin, 3, 3) OIHW weight + (Cout,1,1,1) gain -> standardized OIHW."""
    c_out, c_in, kh, kw = w_oihw.shape
    fan_in = c_in * kh * kw
    w2d = w_oihw.reshape(c_out, fan_in)
    g2d = gain.reshape(c_out, 1)
    out = pl.pallas_call(
        functools.partial(_ws_kernel, fan_in=float(fan_in)),
        out_shape=jax.ShapeDtypeStruct((c_out, fan_in), w_oihw.dtype),
        grid_spec=pltpu.PrefetchScalarGridSpec(
            num_scalar_prefetch=0,
            grid=(1,),
            in_specs=[pl.BlockSpec((c_out, fan_in), lambda i: (0, 0)),
                      pl.BlockSpec((c_out, 1), lambda i: (0, 0))],
            out_specs=pl.BlockSpec((c_out, fan_in), lambda i: (0, 0)),
        ),
    )(w2d, g2d)
    return out.reshape(c_out, c_in, kh, kw)


# ----------------------------------------------------------------------------
# Fully fused BasicBlock kernel:
#   conv1(WS) -> VPGELU -> conv2(WS) (+ optional raw-weight shortcut conv)
#   -> add -> VPGELU, all on one padded per-sample slab kept in VMEM.
# ----------------------------------------------------------------------------
def _make_block_kernel(*, stride, h_out, w_out, c_in, c_out, with_shortcut):
    def kernel(x_ref, w1s_ref, w2s_ref, *rest):
        if with_shortcut:
            w1r_ref, o_ref, mid_ref = rest
        else:
            o_ref, mid_ref = rest

        xp = x_ref[0].astype(jnp.float32)        # (H+2, W+2, Cin) padded slab
        hw = h_out * w_out

        # --- conv1 (standardized weights) and optional shortcut (raw weights)
        #     share the same 9 shifted patch slices. ------------------------
        acc1 = jnp.zeros((hw, c_out), jnp.float32)
        acc_id = jnp.zeros((hw, c_out), jnp.float32) if with_shortcut else None
        for kh in range(3):                      # statically unrolled taps
            for kw in range(3):
                if stride == 1:
                    patch = xp[kh:kh + h_out, kw:kw + w_out, :]
                else:
                    patch = jax.lax.slice(
                        xp, (kh, kw, 0),
                        (kh + stride * (h_out - 1) + 1,
                         kw + stride * (w_out - 1) + 1, c_in),
                        (stride, stride, 1))
                p2 = patch.reshape(hw, c_in)
                acc1 = acc1 + jnp.dot(
                    p2, w1s_ref[kh, kw].astype(jnp.float32),
                    preferred_element_type=jnp.float32)
                if with_shortcut:
                    acc_id = acc_id + jnp.dot(
                        p2, w1r_ref[kh, kw].astype(jnp.float32),
                        preferred_element_type=jnp.float32)

        # --- VPGELU on conv1 output, stashed as a zero-padded VMEM slab so
        #     conv2 needs no boundary logic and no HBM round trip. ----------
        mid_ref[...] = jnp.zeros_like(mid_ref)
        mid_ref[1:1 + h_out, 1:1 + w_out, :] = _vp_gelu(acc1).reshape(
            h_out, w_out, c_out)

        # --- conv2 (stride 1, standardized weights). -----------------------
        acc2 = jnp.zeros((hw, c_out), jnp.float32)
        for kh in range(3):
            for kw in range(3):
                patch = mid_ref[kh:kh + h_out, kw:kw + w_out, :]
                acc2 = acc2 + jnp.dot(
                    patch.reshape(hw, c_out),
                    w2s_ref[kh, kw].astype(jnp.float32),
                    preferred_element_type=jnp.float32)

        # --- residual add + VPGELU -> output slab. -------------------------
        if with_shortcut:
            ident = acc_id
        else:
            # stride == 1 and c_in == c_out: identity is the original input.
            ident = xp[1:1 + h_out, 1:1 + w_out, :].reshape(hw, c_out)

        out = _vp_gelu(acc2 + ident).reshape(h_out, w_out, c_out)
        o_ref[0] = out.astype(o_ref.dtype)

    return kernel


# ----------------------------------------------------------------------------
# BasicBlock.forward (NCHW in / NCHW out, matching the PyTorch module).
# ----------------------------------------------------------------------------
def basic_block_forward(x_nchw, conv1_weight, conv1_gain,
                        conv2_weight, conv2_gain, stride):
    n, c_in, h, w = x_nchw.shape
    c_out = conv1_weight.shape[0]
    with_shortcut = (stride != 1) or (c_in != c_out)

    # Weight standardization (Pallas) for both WS convs (runs once).
    w1_std = standardize_weights(conv1_weight, conv1_gain)
    w2_std = standardize_weights(conv2_weight, conv2_gain)

    # NCHW -> NHWC so channels sit on the lane axis inside the kernel.
    to_hwio = lambda wt: jnp.transpose(wt, (2, 3, 1, 0))
    x = jnp.transpose(x_nchw, (0, 2, 3, 1))

    h_out = (h - 1) // stride + 1
    w_out = (w - 1) // stride + 1

    # Zero-pad spatially (padding=1) so the kernel body has no boundary logic:
    # each grid step sees one contiguous (1, H+2, W+2, Cin) slab.
    xpad = jnp.pad(x, ((0, 0), (1, 1), (1, 1), (0, 0)))
    hp, wp = h + 2, w + 2

    kernel = _make_block_kernel(stride=stride, h_out=h_out, w_out=w_out,
                                c_in=c_in, c_out=c_out,
                                with_shortcut=with_shortcut)

    in_specs = [
        pl.BlockSpec((1, hp, wp, c_in), lambda b: (b, 0, 0, 0)),
        pl.BlockSpec((3, 3, c_in, c_out), lambda b: (0, 0, 0, 0)),
        pl.BlockSpec((3, 3, c_out, c_out), lambda b: (0, 0, 0, 0)),
    ]
    args = [xpad, to_hwio(w1_std), to_hwio(w2_std)]
    if with_shortcut:
        in_specs.append(
            pl.BlockSpec((3, 3, c_in, c_out), lambda b: (0, 0, 0, 0)))
        args.append(to_hwio(conv1_weight))       # raw (non-standardized) weight

    itemsize = jnp.dtype(x.dtype).itemsize
    mm_cols = c_in * c_out + c_out * c_out + (c_in * c_out if with_shortcut else 0)
    flops = 2 * n * h_out * w_out * 9 * mm_cols
    bytes_accessed = (xpad.size + sum(a.size for a in args[1:])
                      + n * h_out * w_out * c_out) * itemsize
    cost = pl.CostEstimate(
        flops=flops,
        transcendentals=2 * n * h_out * w_out * c_out,
        bytes_accessed=bytes_accessed,
    )

    out = pl.pallas_call(
        kernel,
        out_shape=jax.ShapeDtypeStruct((n, h_out, w_out, c_out), x.dtype),
        grid_spec=pltpu.PrefetchScalarGridSpec(
            num_scalar_prefetch=0,
            grid=(n,),
            in_specs=in_specs,
            out_specs=pl.BlockSpec((1, h_out, w_out, c_out),
                                   lambda b: (b, 0, 0, 0)),
            scratch_shapes=[pltpu.VMEM((h_out + 2, w_out + 2, c_out),
                                       jnp.float32)],
        ),
        compiler_params=pltpu.CompilerParams(
            dimension_semantics=("parallel",)),
        cost_estimate=cost,
    )(*args)

    return jnp.transpose(out, (0, 3, 1, 2))


# ----------------------------------------------------------------------------
# Plain-JAX reference (mirrors the PyTorch module exactly).
# ----------------------------------------------------------------------------
def _ref_ws(w, gain):
    mean = jnp.mean(w, axis=(1, 2, 3), keepdims=True)
    var = jnp.var(w, axis=(1, 2, 3), keepdims=True, ddof=1)   # torch unbiased var
    fan_in = w.shape[1] * w.shape[2] * w.shape[3]
    scale = jax.lax.rsqrt(jnp.maximum(var * fan_in, _WS_EPS))
    return (w - mean) * scale * gain


def _ref_conv(x, w, stride):
    return jax.lax.conv_general_dilated(
        x, w, (stride, stride), ((1, 1), (1, 1)),
        dimension_numbers=("NCHW", "OIHW", "NCHW"))


def _ref_gelu(x):
    return jax.nn.gelu(x, approximate=False) * _VP_SCALE


def _ref_forward(x, w1, g1, w2, g2, stride):
    out = _ref_gelu(_ref_conv(x, _ref_ws(w1, g1), stride))
    out = _ref_conv(out, _ref_ws(w2, g2), 1)
    if stride != 1 or x.shape[1] != w1.shape[0]:
        identity = _ref_conv(x, w1, stride)
    else:
        identity = x
    return _ref_gelu(out + identity)


if __name__ == "__main__":
    key = jax.random.PRNGKey(0)
    k_x, k_w1, k_w2, k_g1, k_g2 = jax.random.split(key, 5)

    N, C_IN, C_OUT, H, W, STRIDE = 2, 4, 8, 16, 16, 1

    x = jax.random.normal(k_x, (N, C_IN, H, W), jnp.float32)
    w1 = jax.random.normal(k_w1, (C_OUT, C_IN, 3, 3), jnp.float32)
    w1 = w1 * (1.0 / math.sqrt(C_IN * 9))                 # ~xavier_normal scale
    w2 = jax.random.normal(k_w2, (C_OUT, C_OUT, 3, 3), jnp.float32)
    w2 = w2 * (1.0 / math.sqrt(C_OUT * 9))
    g1 = 1.0 + 0.1 * jax.random.normal(k_g1, (C_OUT, 1, 1, 1), jnp.float32)
    g2 = 1.0 + 0.1 * jax.random.normal(k_g2, (C_OUT, 1, 1, 1), jnp.float32)

    out = basic_block_forward(x, w1, g1, w2, g2, STRIDE)
    out = jax.block_until_ready(out)

    ref = _ref_forward(x, w1, g1, w2, g2, STRIDE)
    assert out.shape == (N, C_OUT, H, W), out.shape
    assert out.dtype == x.dtype
    max_err = float(jnp.max(jnp.abs(out - ref)))
    assert jnp.allclose(out, ref, atol=1e-4, rtol=1e-4), max_err

    print("KERNEL_OK")
</pallas_src>

<mosaic_0001>
module attributes {stable_mosaic.version = 11 : i64} {
  func.func @_ws_kernel(%arg0: i32, %arg1: memref<8x36xf32, #tpu.memory_space<vmem>>, %arg2: memref<8x1xf32, #tpu.memory_space<vmem>>, %arg3: memref<8x36xf32, #tpu.memory_space<vmem>>) attributes {dimension_semantics = [#tpu.dimension_semantics<arbitrary>], iteration_bounds = array<i64: 1>, scalar_prefetch = 0 : i64, scratch_operands = 0 : i64, tpu.core_type = #tpu.core_type<tc>, window_params = [{pipeline_mode = #tpu.pipeline_mode<synchronous>, transform_indices = @transform_0, window_bounds = array<i64: 8, 36>}, {pipeline_mode = #tpu.pipeline_mode<synchronous>, transform_indices = @transform_1, window_bounds = array<i64: 8, 1>}, {pipeline_mode = #tpu.pipeline_mode<synchronous>, transform_indices = @transform_2, window_bounds = array<i64: 8, 36>}]} {
    %c0 = arith.constant 0 : index
    %c0_0 = arith.constant 0 : index
    %0 = vector.load %arg1[%c0, %c0_0] : memref<8x36xf32, #tpu.memory_space<vmem>>, vector<8x36xf32>
    %c0_1 = arith.constant 0 : index
    %c0_2 = arith.constant 0 : index
    %1 = vector.load %arg2[%c0_1, %c0_2] : memref<8x1xf32, #tpu.memory_space<vmem>>, vector<8x1xf32>
    %cst = arith.constant dense<0.000000e+00> : vector<8xf32>
    %2 = vector.multi_reduction <add>, %0, %cst [1] : vector<8x36xf32> to vector<8xf32>
    %3 = vector.shape_cast %2 : vector<8xf32> to vector<8x1xf32>
    %cst_3 = arith.constant 3.600000e+01 : f32
    %4 = vector.broadcast %cst_3 : f32 to vector<8x1xf32>
    %5 = arith.divf %3, %4 : vector<8x1xf32>
    %6 = vector.broadcast %5 : vector<8x1xf32> to vector<8x36xf32>
    %7 = arith.subf %0, %6 : vector<8x36xf32>
    %8 = arith.mulf %7, %7 : vector<8x36xf32>
    %cst_4 = arith.constant dense<0.000000e+00> : vector<8xf32>
    %9 = vector.multi_reduction <add>, %8, %cst_4 [1] : vector<8x36xf32> to vector<8xf32>
    %10 = vector.shape_cast %9 : vector<8xf32> to vector<8x1xf32>
    %cst_5 = arith.constant 3.500000e+01 : f32
    %11 = vector.broadcast %cst_5 : f32 to vector<8x1xf32>
    %12 = arith.divf %10, %11 : vector<8x1xf32>
    %cst_6 = arith.constant 3.600000e+01 : f32
    %13 = vector.broadcast %cst_6 : f32 to vector<8x1xf32>
    %14 = arith.mulf %12, %13 : vector<8x1xf32>
    %cst_7 = arith.constant 9.99999974E-5 : f32
    %15 = vector.broadcast %cst_7 : f32 to vector<8x1xf32>
    %16 = arith.maximumf %14, %15 : vector<8x1xf32>
    %17 = math.rsqrt %16 : vector<8x1xf32>
    %18 = vector.broadcast %5 : vector<8x1xf32> to vector<8x36xf32>
    %19 = arith.subf %0, %18 : vector<8x36xf32>
    %20 = vector.broadcast %17 : vector<8x1xf32> to vector<8x36xf32>
    %21 = arith.mulf %19, %20 : vector<8x36xf32>
    %22 = vector.broadcast %1 : vector<8x1xf32> to vector<8x36xf32>
    %23 = arith.mulf %21, %22 : vector<8x36xf32>
    %c0_8 = arith.constant 0 : index
    %c0_9 = arith.constant 0 : index
    %24 = vector.load %arg3[%c0_8, %c0_9] : memref<8x36xf32, #tpu.memory_space<vmem>>, vector<8x36xf32>
    tpu.vector_store %arg3[%c0_8, %c0_9], %23 {strides = array<i32>} : memref<8x36xf32, #tpu.memory_space<vmem>>, vector<8x36xf32>,
    return
  }
  func.func @transform_0(%arg0: i32) -> (i32, i32) {
    %c0_i32 = arith.constant 0 : i32
    %c0_i32_0 = arith.constant 0 : i32
    %c0_i32_1 = arith.constant 0 : i32
    return %c0_i32, %c0_i32_0 : i32, i32
  }
  func.func @transform_1(%arg0: i32) -> (i32, i32) {
    %c0_i32 = arith.constant 0 : i32
    %c0_i32_0 = arith.constant 0 : i32
    %c0_i32_1 = arith.constant 0 : i32
    return %c0_i32, %c0_i32_0 : i32, i32
  }
  func.func @transform_2(%arg0: i32) -> (i32, i32) {
    %c0_i32 = arith.constant 0 : i32
    %c0_i32_0 = arith.constant 0 : i32
    %c0_i32_1 = arith.constant 0 : i32
    return %c0_i32, %c0_i32_0 : i32, i32
  }
}

</mosaic_0001>

<llo_original>
// kernel: tpu_custom_call.1
$region0: #{tpu_custom_call.1}
  #allocation0 [shape = 'u32[]', space=smem, size = 0x4, offset = 0x4, fixed_abs, tag = 'smem constant byte address 0x4 - core index']
  #allocation1 [shape = 'u32[72,128]{1,0:T(1,128)}', space=vmem, size = 0x9000, scoped, tag = 'internal scratch']
  %s0 = inlined_call_operand.vmem [shape: f32[8,36], index: 0, kind: input, shape index: {}]
  %s1 = inlined_call_operand.vmem [shape: f32[8,1], index: 1, kind: input, shape index: {}]
  %s2 = inlined_call_operand.hbm [shape: f32[8,36], index: 2, kind: output, shape index: {}]
  %s3 = sld [smem:[#allocation0]]
  $region18: #{tpu_custom_call.1} parent=0
    _
  %s5 = ssub.s32 1, %s3
  %s6 = scalar_select 0, %s5, %s3
  $region1: #{tpu_custom_call.1} parent=0
    #allocation2 [shape = 'u8[4096]{0}', space=vmem, size = 0x1000, scoped, tag = 'output window, operand 0, single buffered']
    #allocation3 [shape = 's32[1]{0}', space=sflag, size = 0x4, scoped, tag = 'scoped memory for tpu_custom_call.1']
    %7 = vsyncpa [#allocation3], 0
    // Predicated region
    $region2: #{tpu_custom_call.1} parent=1 // pred_check
      _
    $region3: #{tpu_custom_call.1} parent=1 // pred_check_branch
      %9 = sbr.rel (0) target = $region5
    $region4: #{tpu_custom_call.1} parent=1 // pred_region
      _
    $region5: #{tpu_custom_call.1} parent=1 // pred_fallthru
      _
    // Predicated region
    $region6: #{tpu_custom_call.1} parent=1 // pred_check
      _
    $region7: #{tpu_custom_call.1} parent=1 // pred_check_branch
      %11 = sbr.rel (0) target = $region9
    $region8: #{tpu_custom_call.1} parent=1 // pred_region
      _
    $region9: #{tpu_custom_call.1} parent=1 // pred_fallthru
      _
    %v12 = vld [vmem:[%s0] sm:$0xff]
    %v13 = vld [vmem:[%s1] sm:$0xff]
    %vm14 = vcmask 293888
    %v15 = vsel %vm14, %v12, 0.0
    %16 = vadd.xlane.f32.xlu0 %v15
    %v17 = vpop.xlane.xlu0 %16
    %v18 = vrcp.pop 36.0
    %v19 = vmul.f32 36.0, %v18
    %v20 = vsub.f32 1.0, %v19
    %v21 = vmul.f32 %v18, %v20
    %v22 = vadd.f32 %v18, %v21
    %vm23 = vweird.f32 %v18
    %v24 = vsel %vm23, %v18, %v22
    %v25 = vmul.f32 %v17, %v24
    %v26 = vsub.f32 %v12, %v25
    %v27 = vmul.f32 %v26, %v26
    %v28 = vsel %vm14, %v27, 0.0
    %29 = vadd.xlane.f32.xlu0 %v28
    %v30 = vpop.xlane.xlu0 %29
    %v31 = vrcp.pop 35.0
    %v32 = vmul.f32 35.0, %v31
    %v33 = vsub.f32 1.0, %v32
    %v34 = vmul.f32 %v31, %v33
    %v35 = vadd.f32 %v31, %v34
    %vm36 = vweird.f32 %v31
    %v37 = vsel %vm36, %v31, %v35
    %v38 = vmul.f32 %v30, %v37
    %v39 = vmul.f32 %v38, 36.0
    %v40 = vmax.f32 %v39, 0.0001
    %v41 = vrsqrt.pop %v40
    %v42 = vmul.f32 %v41, %v40
    %v43 = vmul.f32 %v42, %v41
    %v44 = vmul.f32 0.5, %v43
    %v45 = vsub.f32 1.5, %v44
    %v46 = vmul.f32 %v41, %v45
    %vm47 = vweird.f32 %v40
    %vm48 = vweird.f32 %v41
    %vm49 = vmor %vm47, %vm48
    %v50 = vsel %vm49, %v41, %v46
    %v51 = vmul.f32 %v26, %v50
    %53 = vset.pattern.permute.xlu0 0
    %54 = vperm.xlu0 %53, %v13
    %v55 = vpop.permute.xlu0 %54
    %v57 = vmul.f32 %v51, %v55
    %58 = vst.msk [vmem:[#allocation2] sm:$0xff] %vm14, %v57
    // Predicated region
    $region10: #{tpu_custom_call.1} parent=1 // pred_check
      _
    $region11: #{tpu_custom_call.1} parent=1 // pred_check_branch
      %60 = sbr.rel (0) target = $region13
    $region12: #{tpu_custom_call.1} parent=1 // pred_region
      %62 = vsyncadd [#allocation3], 0
      %s64 = sshll.u32 [#allocation2], 4
      %s65 = int_to_ptr.vmem [resolvable:$true] %s64
      %s66 = sshll.u32 %s2, 4
      %s67 = int_to_ptr.hbm [resolvable:$true] %s66
      %69 = dma.vmem_to_hbm [thread:$0]  %s65, 128, %s67, [#allocation3]
    $region13: #{tpu_custom_call.1} parent=1 // pred_fallthru
      _
    // Predicated region
    $region14: #{tpu_custom_call.1} parent=1 // pred_check
      _
    $region15: #{tpu_custom_call.1} parent=1 // pred_check_branch
      %71 = sbr.rel (0) target = $region17
    $region16: #{tpu_custom_call.1} parent=1 // pred_region
      %73 = dma.done [#allocation3], 128
    $region17: #{tpu_custom_call.1} parent=1 // pred_fallthru
      _
    %74 = vsyncpa [#allocation3], 1

</llo_original>
